<compile_context>
chip_gen: v5e
topology: v5e:2x2
jax: 0.10.0
libtpu: 0.0.40
codegen_flags: <defaults>
</compile_context>

<pallas_src>
import functools

import jax
import jax.numpy as jnp
from jax import lax
from jax.experimental import pallas as pl
from jax.experimental.pallas import tpu as pltpu


def _round_up(x, m):
    return (x + m - 1) // m * m


def _online_contrastive_kernel(ib_ref, jb_ref,          # scalar prefetch (SMEM)
                               xr_ref, xct_ref,         # [TM, D], [D, TN]
                               sqr_ref, sqc_ref,        # [TM, 1], [1, TN] f32
                               lr_ref, lc_ref,          # [TM, 1], [1, TN] i32
                               vc_ref,                  # [1, TN] f32 col validity
                               out_ref,                 # [TM, TN] f32 accumulator
                               *, margin, needs_bounds):
    t = pl.program_id(0)
    i_blk = ib_ref[t]
    j_blk = jb_ref[t]

    @pl.when(t == 0)
    def _init():
        out_ref[...] = jnp.zeros_like(out_ref)

    def tile_val(diagonal):
        xi = xr_ref[...]                                 # [TM, D] (f32 or bf16)
        xjt = xct_ref[...]                               # [D, TN]
        # Gram tile on the MXU; RHS is already (K, N) so no in-kernel transpose.
        gram = lax.dot_general(xi, xjt,
                               dimension_numbers=(((1,), (0,)), ((), ())),
                               preferred_element_type=jnp.float32)  # [TM, TN]
        d2 = sqr_ref[...] + sqc_ref[...] - 2.0 * gram    # [TM,1]+[1,TN]-[TM,TN]
        d2 = jnp.maximum(d2, 0.0)

        same = lr_ref[...] == lc_ref[...]                # [TM,1]==[1,TN]
        dist = jnp.sqrt(d2)
        hinge = jnp.maximum(margin - dist, 0.0)
        # Fused positive / negative terms (single where).
        val = jnp.where(same, d2, hinge * hinge)
        if needs_bounds:
            # Padded columns (and hence all padded pairs in the upper triangle)
            # are zeroed with a single broadcast multiply; no iota/compare.
            val = val * vc_ref[...]
        if diagonal:
            tm, tn = val.shape
            li = lax.broadcasted_iota(jnp.int32, (tm, tn), 0)
            lj = lax.broadcasted_iota(jnp.int32, (tm, tn), 1)
            val = jnp.where(li < lj, val, 0.0)           # strict upper triangle
        return val

    @pl.when(i_blk == j_blk)
    def _diag_tile():
        out_ref[...] += tile_val(True)

    @pl.when(i_blk != j_blk)
    def _upper_tile():
        out_ref[...] += tile_val(False)


def online_contrastive_loss(embeddings, target, margin, *, tile=None,
                            compute_dtype=jnp.float32):
    """embeddings: [B, D] float, target: [B] int -> scalar loss (all-pairs)."""
    b, d = embeddings.shape
    if b < 2:
        # No pairs exist; torch.mean over an empty tensor is NaN.
        return jnp.asarray(jnp.nan, dtype=jnp.float32)

    compute_dtype = jnp.dtype(compute_dtype)
    itemsize = compute_dtype.itemsize
    align = 8 if itemsize >= 4 else (16 if itemsize == 2 else 32)

    # --- tile selection -----------------------------------------------------
    if tile is None:
        if b <= 256:
            tile = _round_up(b, align)                   # single-tile fast path
        else:
            tile = 512 if d <= 1024 else 256             # small-D: fewer steps
            tile = min(tile, _round_up(b, 128))
    tile = max(align, _round_up(tile, align))
    b_pad = _round_up(b, tile)
    # Multi-tile grids tile the [1, B] column inputs along lanes -> the tile
    # must be a multiple of 128 lanes (a single full-array tile is exempt).
    if b_pad > tile and tile % 128 != 0:
        tile = _round_up(tile, 128)
        b_pad = _round_up(b, tile)

    # Keep double-buffered x tiles + the [tile, tile] accumulator inside a
    # conservative VMEM budget (matters for large D and v7x's 64 MiB VMEM).
    def vmem_need(t_):
        return 4 * t_ * d * itemsize + 2 * t_ * t_ * 4

    while tile > 128 and vmem_need(tile) > (24 << 20):
        tile = max(128, (tile // 2) // 128 * 128)
        b_pad = _round_up(b, tile)

    needs_bounds = b_pad != b

    # --- inputs (pre-oriented so no in-kernel relayout) ----------------------
    x = embeddings.astype(compute_dtype)                 # MXU operand dtype
    xf = x.astype(jnp.float32)
    sq = jnp.sum(xf * xf, axis=-1, keepdims=True)        # [B, 1] f32
    lbl = target.astype(jnp.int32).reshape(b, 1)

    if needs_bounds:
        pad = b_pad - b
        x = jnp.pad(x, ((0, pad), (0, 0)))
        sq = jnp.pad(sq, ((0, pad), (0, 0)))
        lbl = jnp.pad(lbl, ((0, pad), (0, 0)), constant_values=-1)

    x_t = x.T                                            # [D, B_pad] (K, N) layout
    sq_row = sq                                          # [B_pad, 1]
    sq_col = sq.reshape(1, b_pad)                        # [1, B_pad]
    lbl_row = lbl                                        # [B_pad, 1]
    lbl_col = lbl.reshape(1, b_pad)                      # [1, B_pad]
    valid_col = (jnp.arange(b_pad, dtype=jnp.int32) < b
                 ).astype(jnp.float32).reshape(1, b_pad)

    # --- triangle-linearized schedule (scalar prefetch) ----------------------
    n_blk = b_pad // tile
    pairs = [(i, j) for i in range(n_blk) for j in range(i, n_blk)]
    n_steps = len(pairs)                                 # n_blk*(n_blk+1)/2
    ib = jnp.asarray([p[0] for p in pairs], dtype=jnp.int32)
    jb = jnp.asarray([p[1] for p in pairs], dtype=jnp.int32)

    kernel = functools.partial(_online_contrastive_kernel,
                               margin=float(margin), needs_bounds=needs_bounds)

    grid_spec = pltpu.PrefetchScalarGridSpec(
        num_scalar_prefetch=2,
        grid=(n_steps,),
        in_specs=[
            pl.BlockSpec((tile, d), lambda t, ibm, jbm: (ibm[t], 0)),  # x rows
            pl.BlockSpec((d, tile), lambda t, ibm, jbm: (0, jbm[t])),  # x.T cols
            pl.BlockSpec((tile, 1), lambda t, ibm, jbm: (ibm[t], 0)),  # ||x_i||^2
            pl.BlockSpec((1, tile), lambda t, ibm, jbm: (0, jbm[t])),  # ||x_j||^2
            pl.BlockSpec((tile, 1), lambda t, ibm, jbm: (ibm[t], 0)),  # labels (rows)
            pl.BlockSpec((1, tile), lambda t, ibm, jbm: (0, jbm[t])),  # labels (cols)
            pl.BlockSpec((1, tile), lambda t, ibm, jbm: (0, jbm[t])),  # col validity
        ],
        out_specs=pl.BlockSpec((tile, tile), lambda t, ibm, jbm: (0, 0)),
    )

    cost = pl.CostEstimate(
        flops=2 * n_steps * tile * tile * d,
        transcendentals=n_steps * tile * tile,
        bytes_accessed=(n_blk * tile * d * itemsize        # row tiles (resident/run)
                        + n_steps * tile * d * itemsize    # column tiles (per step)
                        + n_steps * tile * 16              # norms/labels/validity
                        + tile * tile * 4),                # accumulator writeback
    )

    out = pl.pallas_call(
        kernel,
        out_shape=jax.ShapeDtypeStruct((tile, tile), jnp.float32),
        grid_spec=grid_spec,
        compiler_params=pltpu.CompilerParams(
            dimension_semantics=("arbitrary",),            # resident accumulator
            vmem_limit_bytes=max(32 << 20, vmem_need(tile) + (8 << 20)),
        ),
        cost_estimate=cost,
    )(ib, jb, x, x_t, sq_row, sq_col, lbl_row, lbl_col, valid_col)

    denom = b * (b - 1) // 2                               # all i<j pairs
    return jnp.sum(out) / jnp.float32(denom)


def _reference_loss(embeddings, target, margin):
    """Pure-JAX reference mirroring the PyTorch gather-based formulation."""
    b = embeddings.shape[0]
    i, j = jnp.triu_indices(b, k=1)
    diff = embeddings[i] - embeddings[j]
    d2 = jnp.sum(diff * diff, axis=1)
    same = target[i] == target[j]
    pos = jnp.where(same, d2, 0.0)
    neg = jnp.where(same, 0.0, jnp.maximum(margin - jnp.sqrt(d2), 0.0) ** 2)
    return (jnp.sum(pos) + jnp.sum(neg)) / d2.shape[0]


if __name__ == "__main__":
    key = jax.random.PRNGKey(0)
    k_emb1, k_lbl1, k_emb2, k_lbl2 = jax.random.split(key, 4)

    margin = 2.5
    D = 32

    # Case 1: small single-tile path (B=8).
    B1 = 8
    emb1 = 0.3 * jax.random.normal(k_emb1, (B1, D), dtype=jnp.float32)
    lbl1 = jax.random.randint(k_lbl1, (B1,), 0, 3, dtype=jnp.int32)
    loss1 = online_contrastive_loss(emb1, lbl1, margin)
    jax.block_until_ready(loss1)
    ref1 = _reference_loss(emb1, lbl1, margin)
    assert jnp.allclose(loss1, ref1, rtol=1e-4, atol=1e-4), (loss1, ref1)

    # Case 2: multi-tile triangle-linearized grid with padding (B=200).
    B2 = 200
    emb2 = 0.3 * jax.random.normal(k_emb2, (B2, D), dtype=jnp.float32)
    lbl2 = jax.random.randint(k_lbl2, (B2,), 0, 5, dtype=jnp.int32)
    loss2 = online_contrastive_loss(emb2, lbl2, margin, tile=128)
    jax.block_until_ready(loss2)
    ref2 = _reference_loss(emb2, lbl2, margin)
    assert jnp.allclose(loss2, ref2, rtol=1e-4, atol=1e-4), (loss2, ref2)

    # Case 3: bf16 MXU path (looser tolerance vs the f32 reference).
    loss3 = online_contrastive_loss(emb2, lbl2, margin, tile=128,
                                    compute_dtype=jnp.bfloat16)
    jax.block_until_ready(loss3)
    assert jnp.allclose(loss3, ref2, rtol=2e-2, atol=2e-2), (loss3, ref2)

    print("KERNEL_OK")
</pallas_src>

<mosaic_0001>
module attributes {stable_mosaic.version = 11 : i64} {
  func.func @_online_contrastive_kernel(%arg0: i32, %arg1: memref<1xi32, #tpu.memory_space<smem>>, %arg2: memref<1xi32, #tpu.memory_space<smem>>, %arg3: memref<8x32xf32, #tpu.memory_space<vmem>>, %arg4: memref<32x8xf32, #tpu.memory_space<vmem>>, %arg5: memref<8x1xf32, #tpu.memory_space<vmem>>, %arg6: memref<1x8xf32, #tpu.memory_space<vmem>>, %arg7: memref<8x1xi32, #tpu.memory_space<vmem>>, %arg8: memref<1x8xi32, #tpu.memory_space<vmem>>, %arg9: memref<1x8xf32, #tpu.memory_space<vmem>>, %arg10: memref<8x8xf32, #tpu.memory_space<vmem>>) attributes {dimension_semantics = [#tpu.dimension_semantics<arbitrary>], iteration_bounds = array<i64: 1>, scalar_prefetch = 2 : i64, scratch_operands = 0 : i64, tpu.core_type = #tpu.core_type<tc>, window_params = [{transform_indices = @transform_0, window_bounds = array<i64: 8, 32>}, {transform_indices = @transform_1, window_bounds = array<i64: 32, 8>}, {transform_indices = @transform_2, window_bounds = array<i64: 8, 1>}, {transform_indices = @transform_3, window_bounds = array<i64: 1, 8>}, {transform_indices = @transform_4, window_bounds = array<i64: 8, 1>}, {transform_indices = @transform_5, window_bounds = array<i64: 1, 8>}, {transform_indices = @transform_6, window_bounds = array<i64: 1, 8>}, {pipeline_mode = #tpu.pipeline_mode<synchronous>, transform_indices = @transform_7, window_bounds = array<i64: 8, 8>}]} {
    %0 = arith.index_cast %arg0 : i32 to index
    %1 = memref.load %arg1[%0] : memref<1xi32, #tpu.memory_space<smem>>
    %2 = arith.index_cast %arg0 : i32 to index
    %3 = memref.load %arg2[%2] : memref<1xi32, #tpu.memory_space<smem>>
    %c0_i32 = arith.constant 0 : i32
    %4 = arith.cmpi eq, %arg0, %c0_i32 : i32
    %5 = arith.extui %4 : i1 to i32
    %c0_i32_0 = arith.constant 0 : i32
    %6 = arith.cmpi ne, %5, %c0_i32_0 : i32
    scf.if %6 {
      %cst = arith.constant 0.000000e+00 : f32
      %13 = vector.broadcast %cst : f32 to vector<8x8xf32>
      %c0 = arith.constant 0 : index
      %c0_3 = arith.constant 0 : index
      %14 = vector.load %arg10[%c0, %c0_3] : memref<8x8xf32, #tpu.memory_space<vmem>>, vector<8x8xf32>
      tpu.vector_store %arg10[%c0, %c0_3], %13 {strides = array<i32>} : memref<8x8xf32, #tpu.memory_space<vmem>>, vector<8x8xf32>,
    } else {
    }
    %7 = arith.cmpi eq, %1, %3 : i32
    %8 = arith.extui %7 : i1 to i32
    %c0_i32_1 = arith.constant 0 : i32
    %9 = arith.cmpi ne, %8, %c0_i32_1 : i32
    scf.if %9 {
      %c0 = arith.constant 0 : index
      %c0_3 = arith.constant 0 : index
      %13 = vector.load %arg10[%c0, %c0_3] : memref<8x8xf32, #tpu.memory_space<vmem>>, vector<8x8xf32>
      %c0_4 = arith.constant 0 : index
      %c0_5 = arith.constant 0 : index
      %14 = vector.load %arg3[%c0_4, %c0_5] : memref<8x32xf32, #tpu.memory_space<vmem>>, vector<8x32xf32>
      %c0_6 = arith.constant 0 : index
      %c0_7 = arith.constant 0 : index
      %15 = vector.load %arg4[%c0_6, %c0_7] : memref<32x8xf32, #tpu.memory_space<vmem>>, vector<32x8xf32>
      %cst = arith.constant dense<0.000000e+00> : vector<8x8xf32>
      %16 = tpu.matmul %14, %15, %cst {dimension_numbers = #tpu.dot_dimension_numbers<[1], [0], [0], [1], [0, 0, 1, 1], [], []>} : vector<8x32xf32>, vector<32x8xf32>, vector<8x8xf32> -> vector<8x8xf32>
      %c0_8 = arith.constant 0 : index
      %c0_9 = arith.constant 0 : index
      %17 = vector.load %arg5[%c0_8, %c0_9] : memref<8x1xf32, #tpu.memory_space<vmem>>, vector<8x1xf32>
      %c0_10 = arith.constant 0 : index
      %c0_11 = arith.constant 0 : index
      %18 = vector.load %arg6[%c0_10, %c0_11] : memref<1x8xf32, #tpu.memory_space<vmem>>, vector<1x8xf32>
      %19 = vector.broadcast %17 : vector<8x1xf32> to vector<8x8xf32>
      %20 = vector.broadcast %18 : vector<1x8xf32> to vector<8x8xf32>
      %21 = arith.addf %19, %20 : vector<8x8xf32>
      %cst_12 = arith.constant 2.000000e+00 : f32
      %22 = vector.broadcast %cst_12 : f32 to vector<8x8xf32>
      %23 = arith.mulf %22, %16 : vector<8x8xf32>
      %24 = arith.subf %21, %23 : vector<8x8xf32>
      %cst_13 = arith.constant 0.000000e+00 : f32
      %25 = vector.broadcast %cst_13 : f32 to vector<8x8xf32>
      %26 = arith.maximumf %24, %25 : vector<8x8xf32>
      %c0_14 = arith.constant 0 : index
      %c0_15 = arith.constant 0 : index
      %27 = vector.load %arg7[%c0_14, %c0_15] : memref<8x1xi32, #tpu.memory_space<vmem>>, vector<8x1xi32>
      %c0_16 = arith.constant 0 : index
      %c0_17 = arith.constant 0 : index
      %28 = vector.load %arg8[%c0_16, %c0_17] : memref<1x8xi32, #tpu.memory_space<vmem>>, vector<1x8xi32>
      %29 = vector.broadcast %27 : vector<8x1xi32> to vector<8x8xi32>
      %30 = vector.broadcast %28 : vector<1x8xi32> to vector<8x8xi32>
      %31 = arith.cmpi eq, %29, %30 : vector<8x8xi32>
      %32 = math.sqrt %26 : vector<8x8xf32>
      %cst_18 = arith.constant 2.500000e+00 : f32
      %33 = vector.broadcast %cst_18 : f32 to vector<8x8xf32>
      %34 = arith.subf %33, %32 : vector<8x8xf32>
      %cst_19 = arith.constant 0.000000e+00 : f32
      %35 = vector.broadcast %cst_19 : f32 to vector<8x8xf32>
      %36 = arith.maximumf %34, %35 : vector<8x8xf32>
      %37 = arith.mulf %36, %36 : vector<8x8xf32>
      %38 = arith.select %31, %26, %37 : vector<8x8xi1>, vector<8x8xf32>
      %39 = tpu.iota {dimensions = array<i32: 0>} : vector<8x8xi32>
      %40 = tpu.iota {dimensions = array<i32: 1>} : vector<8x8xi32>
      %41 = arith.cmpi slt, %39, %40 : vector<8x8xi32>
      %cst_20 = arith.constant 0.000000e+00 : f32
      %42 = vector.broadcast %cst_20 : f32 to vector<8x8xf32>
      %43 = arith.select %41, %38, %42 : vector<8x8xi1>, vector<8x8xf32>
      %44 = arith.addf %13, %43 : vector<8x8xf32>
      %c0_21 = arith.constant 0 : index
      %c0_22 = arith.constant 0 : index
      %45 = vector.load %arg10[%c0_21, %c0_22] : memref<8x8xf32, #tpu.memory_space<vmem>>, vector<8x8xf32>
      tpu.vector_store %arg10[%c0_21, %c0_22], %44 {strides = array<i32>} : memref<8x8xf32, #tpu.memory_space<vmem>>, vector<8x8xf32>,
    } else {
    }
    %10 = arith.cmpi ne, %1, %3 : i32
    %11 = arith.extui %10 : i1 to i32
    %c0_i32_2 = arith.constant 0 : i32
    %12 = arith.cmpi ne, %11, %c0_i32_2 : i32
    scf.if %12 {
      %c0 = arith.constant 0 : index
      %c0_3 = arith.constant 0 : index
      %13 = vector.load %arg10[%c0, %c0_3] : memref<8x8xf32, #tpu.memory_space<vmem>>, vector<8x8xf32>
      %c0_4 = arith.constant 0 : index
      %c0_5 = arith.constant 0 : index
      %14 = vector.load %arg3[%c0_4, %c0_5] : memref<8x32xf32, #tpu.memory_space<vmem>>, vector<8x32xf32>
      %c0_6 = arith.constant 0 : index
      %c0_7 = arith.constant 0 : index
      %15 = vector.load %arg4[%c0_6, %c0_7] : memref<32x8xf32, #tpu.memory_space<vmem>>, vector<32x8xf32>
      %cst = arith.constant dense<0.000000e+00> : vector<8x8xf32>
      %16 = tpu.matmul %14, %15, %cst {dimension_numbers = #tpu.dot_dimension_numbers<[1], [0], [0], [1], [0, 0, 1, 1], [], []>} : vector<8x32xf32>, vector<32x8xf32>, vector<8x8xf32> -> vector<8x8xf32>
      %c0_8 = arith.constant 0 : index
      %c0_9 = arith.constant 0 : index
      %17 = vector.load %arg5[%c0_8, %c0_9] : memref<8x1xf32, #tpu.memory_space<vmem>>, vector<8x1xf32>
      %c0_10 = arith.constant 0 : index
      %c0_11 = arith.constant 0 : index
      %18 = vector.load %arg6[%c0_10, %c0_11] : memref<1x8xf32, #tpu.memory_space<vmem>>, vector<1x8xf32>
      %19 = vector.broadcast %17 : vector<8x1xf32> to vector<8x8xf32>
      %20 = vector.broadcast %18 : vector<1x8xf32> to vector<8x8xf32>
      %21 = arith.addf %19, %20 : vector<8x8xf32>
      %cst_12 = arith.constant 2.000000e+00 : f32
      %22 = vector.broadcast %cst_12 : f32 to vector<8x8xf32>
      %23 = arith.mulf %22, %16 : vector<8x8xf32>
      %24 = arith.subf %21, %23 : vector<8x8xf32>
      %cst_13 = arith.constant 0.000000e+00 : f32
      %25 = vector.broadcast %cst_13 : f32 to vector<8x8xf32>
      %26 = arith.maximumf %24, %25 : vector<8x8xf32>
      %c0_14 = arith.constant 0 : index
      %c0_15 = arith.constant 0 : index
      %27 = vector.load %arg7[%c0_14, %c0_15] : memref<8x1xi32, #tpu.memory_space<vmem>>, vector<8x1xi32>
      %c0_16 = arith.constant 0 : index
      %c0_17 = arith.constant 0 : index
      %28 = vector.load %arg8[%c0_16, %c0_17] : memref<1x8xi32, #tpu.memory_space<vmem>>, vector<1x8xi32>
      %29 = vector.broadcast %27 : vector<8x1xi32> to vector<8x8xi32>
      %30 = vector.broadcast %28 : vector<1x8xi32> to vector<8x8xi32>
      %31 = arith.cmpi eq, %29, %30 : vector<8x8xi32>
      %32 = math.sqrt %26 : vector<8x8xf32>
      %cst_18 = arith.constant 2.500000e+00 : f32
      %33 = vector.broadcast %cst_18 : f32 to vector<8x8xf32>
      %34 = arith.subf %33, %32 : vector<8x8xf32>
      %cst_19 = arith.constant 0.000000e+00 : f32
      %35 = vector.broadcast %cst_19 : f32 to vector<8x8xf32>
      %36 = arith.maximumf %34, %35 : vector<8x8xf32>
      %37 = arith.mulf %36, %36 : vector<8x8xf32>
      %38 = arith.select %31, %26, %37 : vector<8x8xi1>, vector<8x8xf32>
      %39 = arith.addf %13, %38 : vector<8x8xf32>
      %c0_20 = arith.constant 0 : index
      %c0_21 = arith.constant 0 : index
      %40 = vector.load %arg10[%c0_20, %c0_21] : memref<8x8xf32, #tpu.memory_space<vmem>>, vector<8x8xf32>
      tpu.vector_store %arg10[%c0_20, %c0_21], %39 {strides = array<i32>} : memref<8x8xf32, #tpu.memory_space<vmem>>, vector<8x8xf32>,
    } else {
    }
    return
  }
  func.func @transform_0(%arg0: i32, %arg1: memref<1xi32, #tpu.memory_space<smem>>, %arg2: memref<1xi32, #tpu.memory_space<smem>>) -> (i32, i32) {
    %0 = arith.index_cast %arg0 : i32 to index
    %1 = memref.load %arg1[%0] : memref<1xi32, #tpu.memory_space<smem>>
    %c0_i32 = arith.constant 0 : i32
    %c0_i32_0 = arith.constant 0 : i32
    return %1, %c0_i32 : i32, i32
  }
  func.func @transform_1(%arg0: i32, %arg1: memref<1xi32, #tpu.memory_space<smem>>, %arg2: memref<1xi32, #tpu.memory_space<smem>>) -> (i32, i32) {
    %0 = arith.index_cast %arg0 : i32 to index
    %1 = memref.load %arg2[%0] : memref<1xi32, #tpu.memory_space<smem>>
    %c0_i32 = arith.constant 0 : i32
    %c0_i32_0 = arith.constant 0 : i32
    return %c0_i32, %1 : i32, i32
  }
  func.func @transform_2(%arg0: i32, %arg1: memref<1xi32, #tpu.memory_space<smem>>, %arg2: memref<1xi32, #tpu.memory_space<smem>>) -> (i32, i32) {
    %0 = arith.index_cast %arg0 : i32 to index
    %1 = memref.load %arg1[%0] : memref<1xi32, #tpu.memory_space<smem>>
    %c0_i32 = arith.constant 0 : i32
    %c0_i32_0 = arith.constant 0 : i32
    return %1, %c0_i32 : i32, i32
  }
  func.func @transform_3(%arg0: i32, %arg1: memref<1xi32, #tpu.memory_space<smem>>, %arg2: memref<1xi32, #tpu.memory_space<smem>>) -> (i32, i32) {
    %0 = arith.index_cast %arg0 : i32 to index
    %1 = memref.load %arg2[%0] : memref<1xi32, #tpu.memory_space<smem>>
    %c0_i32 = arith.constant 0 : i32
    %c0_i32_0 = arith.constant 0 : i32
    return %c0_i32, %1 : i32, i32
  }
  func.func @transform_4(%arg0: i32, %arg1: memref<1xi32, #tpu.memory_space<smem>>, %arg2: memref<1xi32, #tpu.memory_space<smem>>) -> (i32, i32) {
    %0 = arith.index_cast %arg0 : i32 to index
    %1 = memref.load %arg1[%0] : memref<1xi32, #tpu.memory_space<smem>>
    %c0_i32 = arith.constant 0 : i32
    %c0_i32_0 = arith.constant 0 : i32
    return %1, %c0_i32 : i32, i32
  }
  func.func @transform_5(%arg0: i32, %arg1: memref<1xi32, #tpu.memory_space<smem>>, %arg2: memref<1xi32, #tpu.memory_space<smem>>) -> (i32, i32) {
    %0 = arith.index_cast %arg0 : i32 to index
    %1 = memref.load %arg2[%0] : memref<1xi32, #tpu.memory_space<smem>>
    %c0_i32 = arith.constant 0 : i32
    %c0_i32_0 = arith.constant 0 : i32
    return %c0_i32, %1 : i32, i32
  }
  func.func @transform_6(%arg0: i32, %arg1: memref<1xi32, #tpu.memory_space<smem>>, %arg2: memref<1xi32, #tpu.memory_space<smem>>) -> (i32, i32) {
    %0 = arith.index_cast %arg0 : i32 to index
    %1 = memref.load %arg2[%0] : memref<1xi32, #tpu.memory_space<smem>>
    %c0_i32 = arith.constant 0 : i32
    %c0_i32_0 = arith.constant 0 : i32
    return %c0_i32, %1 : i32, i32
  }
  func.func @transform_7(%arg0: i32, %arg1: memref<1xi32, #tpu.memory_space<smem>>, %arg2: memref<1xi32, #tpu.memory_space<smem>>) -> (i32, i32) {
    %c0_i32 = arith.constant 0 : i32
    %c0_i32_0 = arith.constant 0 : i32
    %c0_i32_1 = arith.constant 0 : i32
    return %c0_i32, %c0_i32_0 : i32, i32
  }
}

</mosaic_0001>

<llo_original>
// kernel: tpu_custom_call.1
$region0: #{tpu_custom_call.1}
  #allocation0 [shape = 'u32[]', space=smem, size = 0x4, offset = 0x4, fixed_abs, tag = 'smem constant byte address 0x4 - core index']
  #allocation1 [shape = 'u32[72,128]{1,0:T(1,128)}', space=vmem, size = 0x9000, scoped, tag = 'internal scratch']
  #allocation2 [shape = 's32[1]{0}', space=sflag, size = 0x4, scoped, tag = 'scoped memory for tpu_custom_call.1']
  #allocation3 [shape = 's32[1]{0:T(128)S(6)}', space=smem, size = 0x200, scoped, tag = 'prefetched SMEM operand 0']
  #allocation4 [shape = 's32[1]{0:T(128)S(6)}', space=smem, size = 0x200, scoped, tag = 'prefetched SMEM operand 1']
  %s0 = inlined_call_operand.<no memory space> [shape: s32[1], index: 0, kind: input, shape index: {}]
  %s1 = inlined_call_operand.<no memory space> [shape: s32[1], index: 1, kind: input, shape index: {}]
  %s2 = inlined_call_operand.vmem [shape: f32[8,32], index: 2, kind: input, shape index: {}]
  %s3 = inlined_call_operand.vmem [shape: f32[32,8], index: 3, kind: input, shape index: {}]
  %s4 = inlined_call_operand.vmem [shape: f32[8,1], index: 4, kind: input, shape index: {}]
  %s5 = inlined_call_operand.vmem [shape: f32[1,8], index: 5, kind: input, shape index: {}]
  %s6 = inlined_call_operand.vmem [shape: s32[8,1], index: 6, kind: input, shape index: {}]
  %s7 = inlined_call_operand.vmem [shape: s32[1,8], index: 7, kind: input, shape index: {}]
  %s8 = inlined_call_operand.vmem [shape: f32[1,8], index: 8, kind: input, shape index: {}]
  %s9 = inlined_call_operand.hbm [shape: f32[8,8], index: 9, kind: output, shape index: {}]
  %s10 = sld [smem:[#allocation0]]
  $region50: #{tpu_custom_call.1} parent=0
    _
  %s12 = ssub.s32 1, %s10
  %s13 = scalar_select 0, %s12, %s10
  %14 = sst [smem:[#allocation3]] %s0
  %15 = sst [smem:[#allocation4]] %s1
  $region1: #{tpu_custom_call.1} parent=0
    #allocation5 [shape = 'u8[4096]{0}', space=vmem, size = 0x1000, scoped, tag = 'output window, operand 0, single buffered']
    #allocation6 [shape = 's32[1]{0}', space=sflag, size = 0x4, scoped, tag = 'scoped memory for tpu_custom_call.1']
    %16 = vsyncpa [#allocation6], 0
    // Predicated region
    $region2: #{tpu_custom_call.1} parent=1 // pred_check
      _
    $region3: #{tpu_custom_call.1} parent=1 // pred_check_branch
      %18 = sbr.rel (0) target = $region5
    $region4: #{tpu_custom_call.1} parent=1 // pred_region
      %s19 = sld [smem:[#allocation3]]
      %p20 = scmp.lt.s32.totalorder %s19, 0
      %s21 = scalar_select %p20, %s19, 0
      %s22 = smul.addr %s21, 8
      %s23 = scalar_lea.vmem %s2, %s22
      %s24 = sld [smem:[#allocation3]]
    $region5: #{tpu_custom_call.1} parent=1 // pred_fallthru
      _
    // Predicated region
    $region6: #{tpu_custom_call.1} parent=1 // pred_check
      _
    $region7: #{tpu_custom_call.1} parent=1 // pred_check_branch
      %26 = sbr.rel (0) target = $region9
    $region8: #{tpu_custom_call.1} parent=1 // pred_region
      %s27 = sld [smem:[#allocation4]]
      %p28 = scmp.lt.s32.totalorder %s27, 0
      %s29 = scalar_select %p28, %s27, 0
      %s30 = smul.addr %s29, 8
      %s31 = scalar_lea.vmem %s3, %s30
      %s32 = sld [smem:[#allocation4]]
    $region9: #{tpu_custom_call.1} parent=1 // pred_fallthru
      _
    // Predicated region
    $region10: #{tpu_custom_call.1} parent=1 // pred_check
      _
    $region11: #{tpu_custom_call.1} parent=1 // pred_check_branch
      %34 = sbr.rel (0) target = $region13
    $region12: #{tpu_custom_call.1} parent=1 // pred_region
      %s35 = sld [smem:[#allocation3]]
      %p36 = scmp.lt.s32.totalorder %s35, 0
      %s37 = scalar_select %p36, %s35, 0
      %s38 = smul.addr %s37, 8
      %s39 = scalar_lea.vmem %s4, %s38
      %s40 = sld [smem:[#allocation3]]
    $region13: #{tpu_custom_call.1} parent=1 // pred_fallthru
      _
    // Predicated region
    $region14: #{tpu_custom_call.1} parent=1 // pred_check
      _
    $region15: #{tpu_custom_call.1} parent=1 // pred_check_branch
      %42 = sbr.rel (0) target = $region17
    $region16: #{tpu_custom_call.1} parent=1 // pred_region
      %s43 = sld [smem:[#allocation4]]
      %p44 = scmp.lt.s32.totalorder %s43, 0
      %s45 = scalar_select %p44, %s43, 0
      %s46 = scalar_lea.vmem %s5, %s45
      %s47 = sld [smem:[#allocation4]]
    $region17: #{tpu_custom_call.1} parent=1 // pred_fallthru
      _
    // Predicated region
    $region18: #{tpu_custom_call.1} parent=1 // pred_check
      _
    $region19: #{tpu_custom_call.1} parent=1 // pred_check_branch
      %49 = sbr.rel (0) target = $region21
    $region20: #{tpu_custom_call.1} parent=1 // pred_region
      %s50 = sld [smem:[#allocation3]]
      %p51 = scmp.lt.s32.totalorder %s50, 0
      %s52 = scalar_select %p51, %s50, 0
      %s53 = smul.addr %s52, 8
      %s54 = scalar_lea.vmem %s6, %s53
      %s55 = sld [smem:[#allocation3]]
    $region21: #{tpu_custom_call.1} parent=1 // pred_fallthru
      _
    // Predicated region
    $region22: #{tpu_custom_call.1} parent=1 // pred_check
      _
    $region23: #{tpu_custom_call.1} parent=1 // pred_check_branch
      %57 = sbr.rel (0) target = $region25
    $region24: #{tpu_custom_call.1} parent=1 // pred_region
      %s58 = sld [smem:[#allocation4]]
      %p59 = scmp.lt.s32.totalorder %s58, 0
      %s60 = scalar_select %p59, %s58, 0
      %s61 = scalar_lea.vmem %s7, %s60
      %s62 = sld [smem:[#allocation4]]
    $region25: #{tpu_custom_call.1} parent=1 // pred_fallthru
      _
    // Predicated region
    $region26: #{tpu_custom_call.1} parent=1 // pred_check
      _
    $region27: #{tpu_custom_call.1} parent=1 // pred_check_branch
      %64 = sbr.rel (0) target = $region29
    $region28: #{tpu_custom_call.1} parent=1 // pred_region
      %s65 = sld [smem:[#allocation4]]
      %p66 = scmp.lt.s32.totalorder %s65, 0
      %s67 = scalar_select %p66, %s65, 0
      %s68 = scalar_lea.vmem %s8, %s67
      %s69 = sld [smem:[#allocation4]]
    $region29: #{tpu_custom_call.1} parent=1 // pred_fallthru
      _
    %s70 = sld [smem:[#allocation3]]
    %p71 = scmp.lt.s32.totalorder %s70, 0
    %s72 = scalar_select %p71, %s70, 0
    %s73 = smul.addr %s72, 8
    %s74 = scalar_lea.vmem %s2, %s73
    %s75 = sld [smem:[#allocation4]]
    %p76 = scmp.lt.s32.totalorder %s75, 0
    %s77 = scalar_select %p76, %s75, 0
    %s78 = smul.addr %s77, 8
    %s79 = scalar_lea.vmem %s3, %s78
    %s80 = sld [smem:[#allocation3]]
    %p81 = scmp.lt.s32.totalorder %s80, 0
    %s82 = scalar_select %p81, %s80, 0
    %s83 = smul.addr %s82, 8
    %s84 = scalar_lea.vmem %s4, %s83
    %s85 = sld [smem:[#allocation4]]
    %p86 = scmp.lt.s32.totalorder %s85, 0
    %s87 = scalar_select %p86, %s85, 0
    %s88 = scalar_lea.vmem %s5, %s87
    %s89 = sld [smem:[#allocation3]]
    %p90 = scmp.lt.s32.totalorder %s89, 0
    %s91 = scalar_select %p90, %s89, 0
    %s92 = smul.addr %s91, 8
    %s93 = scalar_lea.vmem %s6, %s92
    %s94 = sld [smem:[#allocation4]]
    %p95 = scmp.lt.s32.totalorder %s94, 0
    %s96 = scalar_select %p95, %s94, 0
    %s97 = scalar_lea.vmem %s7, %s96
    %s98 = sld [smem:[#allocation4]]
    %p99 = scmp.lt.s32.totalorder %s98, 0
    %s100 = scalar_select %p99, %s98, 0
    %s101 = scalar_lea.vmem %s8, %s100
    %s102 = sld [smem:[#allocation3]]
    %p103 = scmp.lt.s32.totalorder %s102, 0
    %s104 = scalar_select %p103, %s102, 0
    %s105 = smul.addr %s104, 8
    %s106 = scalar_lea.vmem %s2, %s105
    %s107 = sld [smem:[#allocation3]]
    %s108 = sld [smem:[#allocation4]]
    %p109 = scmp.lt.s32.totalorder %s108, 0
    %s110 = scalar_select %p109, %s108, 0
    %s111 = smul.addr %s110, 8
    %s112 = scalar_lea.vmem %s3, %s111
    %s113 = sld [smem:[#allocation4]]
    %s114 = sld [smem:[#allocation3]]
    %p115 = scmp.lt.s32.totalorder %s114, 0
    %s116 = scalar_select %p115, %s114, 0
    %s117 = smul.addr %s116, 8
    %s118 = scalar_lea.vmem %s4, %s117
    %s119 = sld [smem:[#allocation3]]
    %s120 = sld [smem:[#allocation4]]
    %p121 = scmp.lt.s32.totalorder %s120, 0
    %s122 = scalar_select %p121, %s120, 0
    %s123 = scalar_lea.vmem %s5, %s122
    %s124 = sld [smem:[#allocation4]]
    %s125 = sld [smem:[#allocation3]]
    %p126 = scmp.lt.s32.totalorder %s125, 0
    %s127 = scalar_select %p126, %s125, 0
    %s128 = smul.addr %s127, 8
    %s129 = scalar_lea.vmem %s6, %s128
    %s130 = sld [smem:[#allocation3]]
    %s131 = sld [smem:[#allocation4]]
    %p132 = scmp.lt.s32.totalorder %s131, 0
    %s133 = scalar_select %p132, %s131, 0
    %s134 = scalar_lea.vmem %s7, %s133
    %s135 = sld [smem:[#allocation4]]
    %s136 = sld [smem:[#allocation4]]
    %p137 = scmp.lt.s32.totalorder %s136, 0
    %s138 = scalar_select %p137, %s136, 0
    %s139 = scalar_lea.vmem %s8, %s138
    %s140 = sld [smem:[#allocation4]]
    %s141 = sld [smem:[#allocation3]]
    %s142 = sld [smem:[#allocation4]]
    %p143 = scmp.eq.s32.totalorder 0, 0
    // Predicated region
    $region30: #{tpu_custom_call.1} parent=1 // pred_check
      %p144 = pneg %p143
    $region31: #{tpu_custom_call.1} parent=1 // pred_check_branch
      %146 = sbr.rel (%p144) target = $region33
    $region32: #{tpu_custom_call.1} parent=1 // pred_region
      %vm147 = vcmask 64512
      %148 = vst.msk [vmem:[#allocation5] sm:$0xff] %vm147, 0.0
    $region33: #{tpu_custom_call.1} parent=1 // pred_fallthru
      _
    %p149 = scmp.eq.s32.totalorder %s141, %s142
    // Predicated region
    $region34: #{tpu_custom_call.1} parent=1 // pred_check
      %p150 = pneg %p149
    $region35: #{tpu_custom_call.1} parent=1 // pred_check_branch
      %152 = sbr.rel (%p150) target = $region37
    $region36: #{tpu_custom_call.1} parent=1 // pred_region
      %v153 = vld [vmem:[#allocation5] sm:$0xff]
      %v154 = vld [vmem:[%s106] sm:$0xff]
      %v155 = vld [vmem:[%s112] sm:$0xff]
      %v156 = vld [vmem:[%s112 + $0x8] sm:$0xff]
      %v157 = vld [vmem:[%s112 + $0x10] sm:$0xff]
      %v158 = vld [vmem:[%s112 + $0x18] sm:$0xff]
      %vm159 = vcmask 261120
      %v161 = vsel %vm159, %v154, 0
      %163 = vmatpush.msra.mxu0 0.0
      %164 = vmatpush.msra.mxu0 0.0
      %165 = vmatpush.msra.mxu0 0.0
      %166 = vmatpush.msra.mxu0 0.0
      %167 = vmatpush.msra.mxu0 0.0
      %168 = vmatpush.msra.mxu0 0.0
      %169 = vmatpush.msra.mxu0 0.0
      %170 = vmatpush.msra.mxu0 0.0
      %171 = vmatpush.msra.mxu0 0.0
      %172 = vmatpush.msra.mxu0 0.0
      %173 = vmatpush.msra.mxu0 0.0
      %174 = vmatpush.msra.mxu0 0.0
      %175 = vmatpush.msra.mxu0 %v158
      %176 = vmatpush.msra.mxu0 %v157
      %177 = vmatpush.msra.mxu0 %v156
      %178 = vmatpush.msra.mxu0 %v155
      %179 = vmatmul.f32.gmra.mxu0 %v161
      %v180 = vpop.f32.mrf.mxu0
      %v181 = vadd.f32 0.0, %v180
      %182 = vdwg.mxu0
      %v183 = vld [vmem:[%s118] sm:$0xff]
      %v184 = vld [vmem:[%s123] sm:$0x1]
      %186 = vset.pattern.permute.xlu0 0
      %187 = vperm.xlu0 %186, %v183
      %v188 = vpop.permute.xlu0 %187
      %v191 = vperm.slane %v184, 0
      %v193 = vadd.f32 %v188, %v191
      %v194 = vmul.f32 %v181, 2.0
      %v195 = vsub.f32 %v193, %v194
      %v196 = vmax.f32 %v195, 0.0
      %v197 = vld [vmem:[%s129] sm:$0xff]
      %v198 = vld [vmem:[%s134] sm:$0x1]
      %199 = vset.pattern.permute.xlu0 0
      %200 = vperm.xlu0 %199, %v197
      %v201 = vpop.permute.xlu0 %200
      %v202 = vperm.slane %v198, 0
      %vm203 = vcmp.eq.s32.totalorder %v201, %v202
      %v204 = vrsqrt.pop %v196
      %v205 = vmul.f32 %v204, %v196
      %v206 = vmul.f32 %v205, %v204
      %v207 = vmul.f32 0.5, %v206
      %v208 = vsub.f32 1.5, %v207
      %v209 = vmul.f32 %v204, %v208
      %v210 = vmul.f32 %v196, %v209
      %vm211 = vcmp.eq.f32.partialorder %v196, inf
      %v212 = vsel %vm211, %v196, %v210
      %vm213 = vcmp.eq.f32.partialorder %v196, 0.0
      %v214 = vand.u32 %v196, 2147483648
      %v215 = vsel %vm213, %v214, %v212
      %v216 = vsub.f32 2.5, %v215
      %v217 = vmax.f32 %v216, 0.0
      %v218 = vmul.f32 %v217, %v217
      %v219 = vsel %vm203, %v196, %v218
      %v220 = vlaneseq
      %v221 = vshrl.u32 %v220, 7
      %v222 = vlaneseq
      %v223 = vand.u32 %v222, 127
      %vm224 = vcmp.lt.s32.totalorder %v221, %v223
      %v225 = vsel %vm224, %v219, 0.0
      %v226 = vadd.f32 %v153, %v225
      %vm227 = vcmask 64512
      %228 = vst.msk [vmem:[#allocation5] sm:$0xff] %vm227, %v226
    $region37: #{tpu_custom_call.1} parent=1 // pred_fallthru
      _
    %p229 = scmp.ne.s32.totalorder %s141, %s142
    // Predicated region
    $region38: #{tpu_custom_call.1} parent=1 // pred_check
      %p230 = pneg %p229
    $region39: #{tpu_custom_call.1} parent=1 // pred_check_branch
      %232 = sbr.rel (%p230) target = $region41
    $region40: #{tpu_custom_call.1} parent=1 // pred_region
      %v233 = vld [vmem:[#allocation5] sm:$0xff]
      %v234 = vld [vmem:[%s106] sm:$0xff]
      %v235 = vld [vmem:[%s112] sm:$0xff]
      %v236 = vld [vmem:[%s112 + $0x8] sm:$0xff]
      %v237 = vld [vmem:[%s112 + $0x10] sm:$0xff]
      %v238 = vld [vmem:[%s112 + $0x18] sm:$0xff]
      %vm239 = vcmask 261120
      %v241 = vsel %vm239, %v234, 0
      %243 = vmatpush.msra.mxu0 0.0
      %244 = vmatpush.msra.mxu0 0.0
      %245 = vmatpush.msra.mxu0 0.0
      %246 = vmatpush.msra.mxu0 0.0
      %247 = vmatpush.msra.mxu0 0.0
      %248 = vmatpush.msra.mxu0 0.0
      %249 = vmatpush.msra.mxu0 0.0
      %250 = vmatpush.msra.mxu0 0.0
      %251 = vmatpush.msra.mxu0 0.0
      %252 = vmatpush.msra.mxu0 0.0
      %253 = vmatpush.msra.mxu0 0.0
      %254 = vmatpush.msra.mxu0 0.0
      %255 = vmatpush.msra.mxu0 %v238
      %256 = vmatpush.msra.mxu0 %v237
      %257 = vmatpush.msra.mxu0 %v236
      %258 = vmatpush.msra.mxu0 %v235
      %259 = vmatmul.f32.gmra.mxu0 %v241
      %v260 = vpop.f32.mrf.mxu0
      %v261 = vadd.f32 0.0, %v260
      %262 = vdwg.mxu0
      %v263 = vld [vmem:[%s118] sm:$0xff]
      %v264 = vld [vmem:[%s123] sm:$0x1]
      %266 = vset.pattern.permute.xlu0 0
      %267 = vperm.xlu0 %266, %v263
      %v268 = vpop.permute.xlu0 %267
      %v271 = vperm.slane %v264, 0
      %v273 = vadd.f32 %v268, %v271
      %v274 = vmul.f32 %v261, 2.0
      %v275 = vsub.f32 %v273, %v274
      %v276 = vmax.f32 %v275, 0.0
      %v277 = vld [vmem:[%s129] sm:$0xff]
      %v278 = vld [vmem:[%s134] sm:$0x1]
      %279 = vset.pattern.permute.xlu0 0
      %280 = vperm.xlu0 %279, %v277
      %v281 = vpop.permute.xlu0 %280
      %v282 = vperm.slane %v278, 0
      %vm283 = vcmp.eq.s32.totalorder %v281, %v282
      %v284 = vrsqrt.pop %v276
      %v285 = vmul.f32 %v284, %v276
      %v286 = vmul.f32 %v285, %v284
      %v287 = vmul.f32 0.5, %v286
      %v288 = vsub.f32 1.5, %v287
      %v289 = vmul.f32 %v284, %v288
      %v290 = vmul.f32 %v276, %v289
      %vm291 = vcmp.eq.f32.partialorder %v276, inf
      %v292 = vsel %vm291, %v276, %v290
      %vm293 = vcmp.eq.f32.partialorder %v276, 0.0
      %v294 = vand.u32 %v276, 2147483648
      %v295 = vsel %vm293, %v294, %v292
      %v296 = vsub.f32 2.5, %v295
      %v297 = vmax.f32 %v296, 0.0
      %v298 = vmul.f32 %v297, %v297
      %v299 = vsel %vm283, %v276, %v298
      %v300 = vadd.f32 %v233, %v299
      %vm301 = vcmask 64512
      %302 = vst.msk [vmem:[#allocation5] sm:$0xff] %vm301, %v300
    $region41: #{tpu_custom_call.1} parent=1 // pred_fallthru
      _
    // Predicated region
    $region42: #{tpu_custom_call.1} parent=1 // pred_check
      _
    $region43: #{tpu_custom_call.1} parent=1 // pred_check_branch
      %304 = sbr.rel (0) target = $region45
    $region44: #{tpu_custom_call.1} parent=1 // pred_region
      %306 = vsyncadd [#allocation6], 0
      %s308 = sshll.u32 [#allocation5], 4
      %s309 = int_to_ptr.vmem [resolvable:$true] %s308
      %s310 = sshll.u32 %s9, 4
      %s311 = int_to_ptr.hbm [resolvable:$true] %s310
      %313 = dma.vmem_to_hbm [thread:$0]  %s309, 128, %s311, [#allocation6]
    $region45: #{tpu_custom_call.1} parent=1 // pred_fallthru
      _
    // Predicated region
    $region46: #{tpu_custom_call.1} parent=1 // pred_check
      _
    $region47: #{tpu_custom_call.1} parent=1 // pred_check_branch
      %315 = sbr.rel (0) target = $region49
    $region48: #{tpu_custom_call.1} parent=1 // pred_region
      %317 = dma.done [#allocation6], 128
    $region49: #{tpu_custom_call.1} parent=1 // pred_fallthru
      _
    %318 = vsyncpa [#allocation6], 1

</llo_original>
